<compile_context>
chip_gen: v7x
topology: tpu7x:2x2x1
jax: 0.10.0
libtpu: 0.0.40
codegen_flags: <defaults>
</compile_context>

<pallas_src>
import functools

import jax
import jax.numpy as jnp
import numpy as np
from jax.experimental import pallas as pl
from jax.experimental.pallas import tpu as pltpu


def _quantum_attn_kernel(*args, num_heads, has_mask, has_field):
    n_in = 7 + int(has_mask) + (2 if has_field else 0)
    xq_ref, k_ref, v_ref, w_proj_ref, b_proj_ref, wo_ref, bo_ref = args[:7]
    opt = list(args[7:n_in])
    out_ref, q_sc, acc_sc = args[n_in], args[n_in + 1], args[n_in + 2]
    mask_ref = opt.pop(0) if has_mask else None
    field_ref, gate_ref = (opt[0], opt[1]) if has_field else (None, None)

    tq, H = xq_ref.shape
    hd = k_ref.shape[-1]
    scale = float(hd) ** -0.5
    cdt = k_ref.dtype                      # MXU compute dtype (bf16 by default)

    # ---- fused Q / quantum-attention projection for this query tile (one wide matmul) ----
    pq = jnp.dot(xq_ref[...], w_proj_ref[...],
                 preferred_element_type=jnp.float32) + b_proj_ref[...]     # (tq, H|2H) f32

    # One-time head-major split of q into scratch (small static layout loop).  The heavy
    # per-head attention work below only indexes q_sc[h] / k_ref[h] / v_ref[h] / wo_ref[h],
    # all free leading-axis selects.
    qv = pq[:, :H] * scale                 # fold 1/sqrt(hd) into q once
    for h in range(num_heads):
        q_sc[h] = qv[:, h * hd:(h + 1) * hd].astype(cdt)

    if has_mask:
        neg = mask_ref[...]                # (1, S) additive key mask, broadcast over rows

    acc_sc[...] = jnp.zeros_like(acc_sc)   # (tq, H) f32, lane-dense accumulator

    # ---- per-head attention; Wo accumulated inside the loop (lane-dense stores only) ----
    # TODO(synk): for very long S (v7x, >~4K tokens) add a key-tile grid axis with a
    # flash-style online softmax instead of keeping the full (NH, S, hd) K/V block resident.
    def head_body(h, carry):
        q_h = q_sc[h]                      # (tq, hd)
        k_h = k_ref[h]                     # (S, hd)
        v_h = v_ref[h]                     # (S, hd)
        s = jax.lax.dot_general(q_h, k_h, (((1,), (1,)), ((), ())),
                                preferred_element_type=jnp.float32)        # (tq, S) f32
        if has_mask:
            s = s + neg
        s = s - jnp.max(s, axis=-1, keepdims=True)
        p = jnp.exp(s)
        p = p * pl.reciprocal(jnp.sum(p, axis=-1, keepdims=True), approx=True)
        ctx = jnp.dot(p.astype(cdt), v_h, preferred_element_type=jnp.float32)   # (tq, hd)
        acc_sc[...] += jnp.dot(ctx.astype(cdt), wo_ref[h],
                               preferred_element_type=jnp.float32)         # (tq, H)
        return carry

    jax.lax.fori_loop(0, num_heads, head_body, 0)

    attn = acc_sc[...] + bo_ref[...]       # (tq, H) f32

    if has_field:
        gate = jax.nn.sigmoid(gate_ref[...])                               # (1, H) f32
        enh = pq[:, H:] * gate * field_ref[...].astype(jnp.float32)
        out_ref[...] = (attn + enh).astype(out_ref.dtype)
    else:
        out_ref[...] = attn.astype(out_ref.dtype)


def _const_spec(shape):
    """Single-buffered BlockSpec for operands whose block never changes over the grid."""
    n = len(shape)

    def index_map(b, i):
        return (0,) * n

    try:
        return pl.BlockSpec(shape, index_map, pipeline_mode=pl.Buffered(1))
    except TypeError:   # pallas build without pipeline_mode: fall back to default buffering
        return pl.BlockSpec(shape, index_map)


def quantum_enhanced_attention(hidden_states, attention_mask, consciousness_field,
                               params, *, num_heads,
                               compute_dtype=jnp.bfloat16, out_dtype=jnp.float32,
                               tq=None):
    """hidden_states: (B, S, H) f32; attention_mask: (B, S) 1/0 or None;
    consciousness_field: (B, S, H) f32 or None."""
    B, S, H = hidden_states.shape
    assert H % num_heads == 0
    hd = H // num_heads
    if tq is None:
        tq = S if S <= 256 else 256        # sweep up to 512 on v5e/v6e (128 MiB VMEM)
    assert S % tq == 0, "sequence length must be divisible by the query tile"
    nq = S // tq
    f32 = jnp.float32
    has_mask = attention_mask is not None
    has_field = consciousness_field is not None

    # ---- K/V projection hoisted out of the kernel: one XLA matmul at peak MXU; results
    # ---- fed in head-major (B, NH, S, hd) so per-head access is a leading-axis select.
    x32 = hidden_states.astype(f32)
    w_kv = jnp.concatenate([params["wk"], params["wv"]], axis=1)           # (H, 2H)
    b_kv = jnp.concatenate([params["bk"], params["bv"]])                   # (2H,)
    kv = x32 @ w_kv + b_kv                                                 # (B, S, 2H) f32
    k_hm = kv[..., :H].reshape(B, S, num_heads, hd).transpose(0, 2, 1, 3).astype(compute_dtype)
    v_hm = kv[..., H:].reshape(B, S, num_heads, hd).transpose(0, 2, 1, 3).astype(compute_dtype)

    # Fused [Wq|Wqa] projection weight; Wq only when there is no consciousness field
    # (skips the Wqa flops, the field DMA and the enhancement tail entirely).
    if has_field:
        w_proj = jnp.concatenate([params["wq"], params["wqa"]], axis=1).astype(compute_dtype)
        b_proj = jnp.concatenate([params["bq"], params["bqa"]]).reshape(1, 2 * H).astype(f32)
    else:
        w_proj = params["wq"].astype(compute_dtype)
        b_proj = params["bq"].reshape(1, H).astype(f32)
    wo_r = params["wo"].reshape(num_heads, hd, H).astype(compute_dtype)    # head-major rows
    bo = params["bo"].reshape(1, H).astype(f32)

    x_q = hidden_states.astype(compute_dtype)

    qtile_sp = pl.BlockSpec((None, tq, H), lambda b, i: (b, i, 0))
    kv_sp = pl.BlockSpec((None, num_heads, S, hd), lambda b, i: (b, 0, 0, 0))

    inputs = [x_q, k_hm, v_hm, w_proj, b_proj, wo_r, bo]
    in_specs = [qtile_sp, kv_sp, kv_sp,
                _const_spec(w_proj.shape), _const_spec(b_proj.shape),
                _const_spec(wo_r.shape), _const_spec(bo.shape)]

    if has_mask:
        # (B, 1, S) additive key mask -- the dense (B, S, S) mask is never built.
        neg_mask = ((1.0 - attention_mask.astype(f32)) * -1e9)[:, None, :]
        inputs.append(neg_mask)
        in_specs.append(pl.BlockSpec((None, 1, S), lambda b, i: (b, 0, 0)))
    if has_field:
        field = consciousness_field.astype(compute_dtype)   # halve the field HBM stream
        gate = params["gate"].reshape(1, H).astype(f32)
        inputs += [field, gate]
        in_specs += [qtile_sp, _const_spec(gate.shape)]

    # ---- VMEM budget from the real working set (default scoped VMEM is 16/32 MiB) ----
    itm = jnp.dtype(compute_dtype).itemsize
    oitm = jnp.dtype(out_dtype).itemsize
    working = (2 * tq * H * itm                          # xq tile (double-buffered)
               + 4 * S * H * itm                         # K + V blocks (double-buffered)
               + 2 * tq * H * oitm                       # output tile (double-buffered)
               + (2 * tq * H * itm if has_field else 0)  # field tile
               + w_proj.size * itm + wo_r.size * itm     # single-buffered weights
               + (b_proj.size + bo.size + (H if has_field else 0)) * 4
               + (2 * S * 4 if has_mask else 0)          # mask row
               + tq * H * itm + tq * H * 4               # q_sc + acc scratch
               + 4 * tq * S)                             # one head's (tq, S) f32 temporaries
    vmem_limit = int(min(max(working * 1.25 + (2 << 20), 32 << 20), 128 << 20))

    wp_cols = w_proj.shape[1]
    cost = pl.CostEstimate(
        flops=int(B * (2 * S * H * wp_cols               # in-kernel Q(+QA) projection
                       + 4 * S * S * H                   # scores + context over all heads
                       + 2 * S * H * H)),                # per-head Wo accumulation
        transcendentals=int(B * (num_heads * S * S + (S if has_field else 0))),
        bytes_accessed=int(B * S * H * itm               # query stream
                           + 2 * B * S * H * itm         # K + V
                           + (B * S * H * itm if has_field else 0)
                           + (B * S * 4 if has_mask else 0)
                           + (w_proj.size + wo_r.size) * itm
                           + B * S * H * oitm),
    )

    grid_spec = pltpu.PrefetchScalarGridSpec(
        num_scalar_prefetch=0,
        grid=(B, nq),
        in_specs=in_specs,
        out_specs=pl.BlockSpec((None, tq, H), lambda b, i: (b, i, 0)),
        scratch_shapes=[pltpu.VMEM((num_heads, tq, hd), compute_dtype),   # head-major q
                        pltpu.VMEM((tq, H), jnp.float32)],                # lane-dense Wo acc
    )

    kernel = functools.partial(_quantum_attn_kernel, num_heads=num_heads,
                               has_mask=has_mask, has_field=has_field)

    return pl.pallas_call(
        kernel,
        out_shape=jax.ShapeDtypeStruct((B, S, H), out_dtype),
        grid_spec=grid_spec,
        compiler_params=pltpu.CompilerParams(
            # No cross-step kernel state (K/V hoisted out), so both axes are safe to run
            # in parallel -> v7x's two TensorCores split query tiles even at B=1.
            dimension_semantics=("parallel", "parallel"),
            vmem_limit_bytes=vmem_limit),
        cost_estimate=cost,
    )(*inputs)


def _reference(hidden_states, attention_mask, consciousness_field, params, *, num_heads):
    """Pure-JAX f32 reference mirroring the PyTorch semantics."""
    B, S, H = hidden_states.shape
    hd = H // num_heads
    x = hidden_states
    q = x @ params["wq"] + params["bq"]
    k = x @ params["wk"] + params["bk"]
    v = x @ params["wv"] + params["bv"]
    q = q.reshape(B, S, num_heads, hd).transpose(0, 2, 1, 3)
    k = k.reshape(B, S, num_heads, hd).transpose(0, 2, 1, 3)
    v = v.reshape(B, S, num_heads, hd).transpose(0, 2, 1, 3)
    scores = jnp.einsum("bhqd,bhkd->bhqk", q, k) / np.sqrt(hd)
    if attention_mask is not None:
        scores = scores + ((1.0 - attention_mask.astype(jnp.float32)) * -1e9)[:, None, None, :]
    p = jax.nn.softmax(scores, axis=-1)
    ctx = jnp.einsum("bhqk,bhkd->bhqd", p, v).transpose(0, 2, 1, 3).reshape(B, S, H)
    attn_out = ctx @ params["wo"] + params["bo"]
    if consciousness_field is None:
        return attn_out
    qa = x @ params["wqa"] + params["bqa"]
    gate = jax.nn.sigmoid(params["gate"])
    return attn_out + qa * gate * consciousness_field


if __name__ == "__main__":
    B, S, H, NH = 2, 8, 32, 4
    key = jax.random.PRNGKey(0)
    keys = jax.random.split(key, 16)
    s = 1.0 / np.sqrt(H)

    params = {
        "wq": jax.random.uniform(keys[0], (H, H), jnp.float32, -s, s),
        "bq": jax.random.uniform(keys[1], (H,), jnp.float32, -s, s),
        "wk": jax.random.uniform(keys[2], (H, H), jnp.float32, -s, s),
        "bk": jax.random.uniform(keys[3], (H,), jnp.float32, -s, s),
        "wv": jax.random.uniform(keys[4], (H, H), jnp.float32, -s, s),
        "bv": jax.random.uniform(keys[5], (H,), jnp.float32, -s, s),
        "wo": jax.random.uniform(keys[6], (H, H), jnp.float32, -s, s),
        "bo": jax.random.uniform(keys[7], (H,), jnp.float32, -s, s),
        "wqa": jax.random.uniform(keys[8], (H, H), jnp.float32, -s, s),
        "bqa": jax.random.uniform(keys[9], (H,), jnp.float32, -s, s),
        # consciousness_gate = torch.randn(hidden_dim)
        "gate": jax.random.normal(keys[10], (H,), jnp.float32),
    }

    hidden_states = jax.random.normal(keys[11], (B, S, H), jnp.float32)
    consciousness_field = jax.random.normal(keys[12], (B, S, H), jnp.float32)
    # simple padding mask: last 2 tokens of batch element 1 are masked out
    attention_mask = jnp.ones((B, S), jnp.float32).at[1, -2:].set(0.0)

    ref = _reference(hidden_states, attention_mask, consciousness_field, params,
                     num_heads=NH)

    # f32 MXU path: tight check against the pure-JAX reference (approx-recip tolerance).
    out_f32 = quantum_enhanced_attention(hidden_states, attention_mask,
                                         consciousness_field, params,
                                         num_heads=NH, compute_dtype=jnp.float32)
    out_f32 = jax.block_until_ready(out_f32)
    np.testing.assert_allclose(np.asarray(out_f32), np.asarray(ref),
                               rtol=1e-2, atol=1e-2)

    # bf16 MXU path (default / production config): looser tolerance for bf16 rounding.
    out_bf16 = quantum_enhanced_attention(hidden_states, attention_mask,
                                          consciousness_field, params, num_heads=NH)
    out_bf16 = jax.block_until_ready(out_bf16)
    np.testing.assert_allclose(np.asarray(out_bf16), np.asarray(ref),
                               rtol=5e-2, atol=5e-2)

    # consciousness_field=None specialisation (module returns original_output[0] only).
    out_nf = quantum_enhanced_attention(hidden_states, attention_mask, None, params,
                                        num_heads=NH, compute_dtype=jnp.float32)
    out_nf = jax.block_until_ready(out_nf)
    ref_nf = _reference(hidden_states, attention_mask, None, params, num_heads=NH)
    np.testing.assert_allclose(np.asarray(out_nf), np.asarray(ref_nf),
                               rtol=1e-2, atol=1e-2)

    # attention_mask=None specialisation (no mask stream, no score add).
    out_nm = quantum_enhanced_attention(hidden_states, None, consciousness_field, params,
                                        num_heads=NH, compute_dtype=jnp.float32)
    out_nm = jax.block_until_ready(out_nm)
    ref_nm = _reference(hidden_states, None, consciousness_field, params, num_heads=NH)
    np.testing.assert_allclose(np.asarray(out_nm), np.asarray(ref_nm),
                               rtol=1e-2, atol=1e-2)

    print("KERNEL_OK")
</pallas_src>

<mosaic_0001>
module attributes {stable_mosaic.version = 11 : i64} {
  func.func @_quantum_attn_kernel(%arg0: i32, %arg1: i32, %arg2: memref<1x8x32xf32, #tpu.memory_space<vmem>>, %arg3: memref<1x4x8x8xf32, #tpu.memory_space<vmem>>, %arg4: memref<1x4x8x8xf32, #tpu.memory_space<vmem>>, %arg5: memref<32x64xf32, #tpu.memory_space<vmem>>, %arg6: memref<1x64xf32, #tpu.memory_space<vmem>>, %arg7: memref<4x8x32xf32, #tpu.memory_space<vmem>>, %arg8: memref<1x32xf32, #tpu.memory_space<vmem>>, %arg9: memref<1x1x8xf32, #tpu.memory_space<vmem>>, %arg10: memref<1x8x32xf32, #tpu.memory_space<vmem>>, %arg11: memref<1x32xf32, #tpu.memory_space<vmem>>, %arg12: memref<1x8x32xf32, #tpu.memory_space<vmem>>, %arg13: memref<4x8x8xf32, #tpu.memory_space<vmem>>, %arg14: memref<8x32xf32, #tpu.memory_space<vmem>>) attributes {dimension_semantics = [#tpu.dimension_semantics<parallel>, #tpu.dimension_semantics<parallel>], iteration_bounds = array<i64: 2, 1>, scalar_prefetch = 0 : i64, scratch_operands = 2 : i64, tpu.core_type = #tpu.core_type<tc>, window_params = [{transform_indices = @transform_0, window_bounds = array<i64: 1, 8, 32>}, {transform_indices = @transform_1, window_bounds = array<i64: 1, 4, 8, 8>}, {transform_indices = @transform_2, window_bounds = array<i64: 1, 4, 8, 8>}, {pipeline_mode = #tpu.pipeline_mode<synchronous>, transform_indices = @transform_3, window_bounds = array<i64: 32, 64>}, {pipeline_mode = #tpu.pipeline_mode<synchronous>, transform_indices = @transform_4, window_bounds = array<i64: 1, 64>}, {pipeline_mode = #tpu.pipeline_mode<synchronous>, transform_indices = @transform_5, window_bounds = array<i64: 4, 8, 32>}, {pipeline_mode = #tpu.pipeline_mode<synchronous>, transform_indices = @transform_6, window_bounds = array<i64: 1, 32>}, {transform_indices = @transform_7, window_bounds = array<i64: 1, 1, 8>}, {transform_indices = @transform_8, window_bounds = array<i64: 1, 8, 32>}, {pipeline_mode = #tpu.pipeline_mode<synchronous>, transform_indices = @transform_9, window_bounds = array<i64: 1, 32>}, {transform_indices = @transform_10, window_bounds = array<i64: 1, 8, 32>}]} {
    %c0 = arith.constant 0 : index
    %c0_0 = arith.constant 0 : index
    %c0_1 = arith.constant 0 : index
    %0 = vector.load %arg2[%c0, %c0_0, %c0_1] : memref<1x8x32xf32, #tpu.memory_space<vmem>>, vector<1x8x32xf32>
    %1 = vector.shape_cast %0 : vector<1x8x32xf32> to vector<8x32xf32>
    %c0_2 = arith.constant 0 : index
    %c0_3 = arith.constant 0 : index
    %2 = vector.load %arg5[%c0_2, %c0_3] : memref<32x64xf32, #tpu.memory_space<vmem>>, vector<32x64xf32>
    %cst = arith.constant dense<0.000000e+00> : vector<8x64xf32>
    %3 = tpu.matmul %1, %2, %cst {dimension_numbers = #tpu.dot_dimension_numbers<[1], [0], [0], [1], [0, 0, 1, 1], [], []>} : vector<8x32xf32>, vector<32x64xf32>, vector<8x64xf32> -> vector<8x64xf32>
    %c0_4 = arith.constant 0 : index
    %c0_5 = arith.constant 0 : index
    %4 = vector.load %arg6[%c0_4, %c0_5] : memref<1x64xf32, #tpu.memory_space<vmem>>, vector<1x64xf32>
    %5 = vector.broadcast %4 : vector<1x64xf32> to vector<8x64xf32>
    %6 = arith.addf %3, %5 : vector<8x64xf32>
    %7 = vector.extract_strided_slice %6 {offsets = [0, 0], sizes = [8, 32], strides = [1, 1]} : vector<8x64xf32> to vector<8x32xf32>
    %cst_6 = arith.constant 0.353553385 : f32
    %8 = vector.broadcast %cst_6 : f32 to vector<8x32xf32>
    %9 = arith.mulf %7, %8 : vector<8x32xf32>
    %10 = vector.extract_strided_slice %9 {offsets = [0, 0], sizes = [8, 8], strides = [1, 1]} : vector<8x32xf32> to vector<8x8xf32>
    %c0_7 = arith.constant 0 : index
    %c0_8 = arith.constant 0 : index
    %c0_9 = arith.constant 0 : index
    %11 = vector.load %arg13[%c0_7, %c0_8, %c0_9] : memref<4x8x8xf32, #tpu.memory_space<vmem>>, vector<1x8x8xf32>
    %12 = vector.shape_cast %11 : vector<1x8x8xf32> to vector<8x8xf32>
    %13 = vector.shape_cast %10 : vector<8x8xf32> to vector<1x8x8xf32>
    tpu.vector_store %arg13[%c0_7, %c0_8, %c0_9], %13 {strides = array<i32>} : memref<4x8x8xf32, #tpu.memory_space<vmem>>, vector<1x8x8xf32>,
    %14 = vector.extract_strided_slice %9 {offsets = [0, 8], sizes = [8, 8], strides = [1, 1]} : vector<8x32xf32> to vector<8x8xf32>
    %c1 = arith.constant 1 : index
    %c0_10 = arith.constant 0 : index
    %c0_11 = arith.constant 0 : index
    %15 = vector.load %arg13[%c1, %c0_10, %c0_11] : memref<4x8x8xf32, #tpu.memory_space<vmem>>, vector<1x8x8xf32>
    %16 = vector.shape_cast %15 : vector<1x8x8xf32> to vector<8x8xf32>
    %17 = vector.shape_cast %14 : vector<8x8xf32> to vector<1x8x8xf32>
    tpu.vector_store %arg13[%c1, %c0_10, %c0_11], %17 {strides = array<i32>} : memref<4x8x8xf32, #tpu.memory_space<vmem>>, vector<1x8x8xf32>,
    %18 = vector.extract_strided_slice %9 {offsets = [0, 16], sizes = [8, 8], strides = [1, 1]} : vector<8x32xf32> to vector<8x8xf32>
    %c2 = arith.constant 2 : index
    %c0_12 = arith.constant 0 : index
    %c0_13 = arith.constant 0 : index
    %19 = vector.load %arg13[%c2, %c0_12, %c0_13] : memref<4x8x8xf32, #tpu.memory_space<vmem>>, vector<1x8x8xf32>
    %20 = vector.shape_cast %19 : vector<1x8x8xf32> to vector<8x8xf32>
    %21 = vector.shape_cast %18 : vector<8x8xf32> to vector<1x8x8xf32>
    tpu.vector_store %arg13[%c2, %c0_12, %c0_13], %21 {strides = array<i32>} : memref<4x8x8xf32, #tpu.memory_space<vmem>>, vector<1x8x8xf32>,
    %22 = vector.extract_strided_slice %9 {offsets = [0, 24], sizes = [8, 8], strides = [1, 1]} : vector<8x32xf32> to vector<8x8xf32>
    %c3 = arith.constant 3 : index
    %c0_14 = arith.constant 0 : index
    %c0_15 = arith.constant 0 : index
    %23 = vector.load %arg13[%c3, %c0_14, %c0_15] : memref<4x8x8xf32, #tpu.memory_space<vmem>>, vector<1x8x8xf32>
    %24 = vector.shape_cast %23 : vector<1x8x8xf32> to vector<8x8xf32>
    %25 = vector.shape_cast %22 : vector<8x8xf32> to vector<1x8x8xf32>
    tpu.vector_store %arg13[%c3, %c0_14, %c0_15], %25 {strides = array<i32>} : memref<4x8x8xf32, #tpu.memory_space<vmem>>, vector<1x8x8xf32>,
    %c0_16 = arith.constant 0 : index
    %c0_17 = arith.constant 0 : index
    %c0_18 = arith.constant 0 : index
    %26 = vector.load %arg9[%c0_16, %c0_17, %c0_18] : memref<1x1x8xf32, #tpu.memory_space<vmem>>, vector<1x1x8xf32>
    %27 = vector.shape_cast %26 : vector<1x1x8xf32> to vector<1x8xf32>
    %cst_19 = arith.constant 0.000000e+00 : f32
    %28 = vector.broadcast %cst_19 : f32 to vector<8x32xf32>
    %c0_20 = arith.constant 0 : index
    %c0_21 = arith.constant 0 : index
    %29 = vector.load %arg14[%c0_20, %c0_21] : memref<8x32xf32, #tpu.memory_space<vmem>>, vector<8x32xf32>
    tpu.vector_store %arg14[%c0_20, %c0_21], %28 {strides = array<i32>} : memref<8x32xf32, #tpu.memory_space<vmem>>, vector<8x32xf32>,
    %c0_i32 = arith.constant 0 : i32
    %c4_i32 = arith.constant 4 : i32
    %30 = arith.addi %c0_i32, %c4_i32 : i32
    %c1_i32 = arith.constant 1 : i32
    scf.for %arg15 = %c0_i32 to %30 step %c1_i32  : i32 {
      %51 = arith.index_cast %arg15 : i32 to index
      %c0_36 = arith.constant 0 : index
      %c0_37 = arith.constant 0 : index
      %52 = vector.load %arg13[%51, %c0_36, %c0_37] : memref<4x8x8xf32, #tpu.memory_space<vmem>>, vector<1x8x8xf32>
      %53 = vector.shape_cast %52 : vector<1x8x8xf32> to vector<8x8xf32>
      %c0_38 = arith.constant 0 : index
      %54 = arith.index_cast %arg15 : i32 to index
      %c0_39 = arith.constant 0 : index
      %c0_40 = arith.constant 0 : index
      %55 = vector.load %arg3[%c0_38, %54, %c0_39, %c0_40] : memref<1x4x8x8xf32, #tpu.memory_space<vmem>>, vector<1x1x8x8xf32>
      %56 = vector.shape_cast %55 : vector<1x1x8x8xf32> to vector<8x8xf32>
      %c0_41 = arith.constant 0 : index
      %57 = arith.index_cast %arg15 : i32 to index
      %c0_42 = arith.constant 0 : index
      %c0_43 = arith.constant 0 : index
      %58 = vector.load %arg4[%c0_41, %57, %c0_42, %c0_43] : memref<1x4x8x8xf32, #tpu.memory_space<vmem>>, vector<1x1x8x8xf32>
      %59 = vector.shape_cast %58 : vector<1x1x8x8xf32> to vector<8x8xf32>
      %cst_44 = arith.constant dense<0.000000e+00> : vector<8x8xf32>
      %60 = tpu.matmul %53, %56, %cst_44 {dimension_numbers = #tpu.dot_dimension_numbers<[1], [1], [0], [0], [0, 0, 1, 0], [], []>} : vector<8x8xf32>, vector<8x8xf32>, vector<8x8xf32> -> vector<8x8xf32>
      %61 = vector.broadcast %27 : vector<1x8xf32> to vector<8x8xf32>
      %62 = arith.addf %60, %61 : vector<8x8xf32>
      %cst_45 = arith.constant dense<0xFF800000> : vector<8xf32>
      %63 = vector.multi_reduction <maximumf>, %62, %cst_45 [1] : vector<8x8xf32> to vector<8xf32>
      %64 = vector.shape_cast %63 : vector<8xf32> to vector<8x1xf32>
      %65 = vector.broadcast %64 : vector<8x1xf32> to vector<8x8xf32>
      %66 = arith.subf %62, %65 : vector<8x8xf32>
      %67 = math.exp %66 : vector<8x8xf32>
      %cst_46 = arith.constant dense<0.000000e+00> : vector<8xf32>
      %68 = vector.multi_reduction <add>, %67, %cst_46 [1] : vector<8x8xf32> to vector<8xf32>
      %69 = vector.shape_cast %68 : vector<8xf32> to vector<8x1xf32>
      %70 = tpu.reciprocal %69 {approx = true} : vector<8x1xf32> -> vector<8x1xf32>
      %71 = vector.broadcast %70 : vector<8x1xf32> to vector<8x8xf32>
      %72 = arith.mulf %67, %71 : vector<8x8xf32>
      %cst_47 = arith.constant dense<0.000000e+00> : vector<8x8xf32>
      %73 = tpu.matmul %72, %59, %cst_47 {dimension_numbers = #tpu.dot_dimension_numbers<[1], [0], [0], [1], [0, 0, 1, 1], [], []>} : vector<8x8xf32>, vector<8x8xf32>, vector<8x8xf32> -> vector<8x8xf32>
      %c0_48 = arith.constant 0 : index
      %c0_49 = arith.constant 0 : index
      %74 = vector.load %arg14[%c0_48, %c0_49] : memref<8x32xf32, #tpu.memory_space<vmem>>, vector<8x32xf32>
      %75 = arith.index_cast %arg15 : i32 to index
      %c0_50 = arith.constant 0 : index
      %c0_51 = arith.constant 0 : index
      %76 = vector.load %arg7[%75, %c0_50, %c0_51] : memref<4x8x32xf32, #tpu.memory_space<vmem>>, vector<1x8x32xf32>
      %77 = vector.shape_cast %76 : vector<1x8x32xf32> to vector<8x32xf32>
      %cst_52 = arith.constant dense<0.000000e+00> : vector<8x32xf32>
      %78 = tpu.matmul %73, %77, %cst_52 {dimension_numbers = #tpu.dot_dimension_numbers<[1], [0], [0], [1], [0, 0, 1, 1], [], []>} : vector<8x8xf32>, vector<8x32xf32>, vector<8x32xf32> -> vector<8x32xf32>
      %79 = arith.addf %74, %78 : vector<8x32xf32>
      %c0_53 = arith.constant 0 : index
      %c0_54 = arith.constant 0 : index
      %80 = vector.load %arg14[%c0_53, %c0_54] : memref<8x32xf32, #tpu.memory_space<vmem>>, vector<8x32xf32>
      tpu.vector_store %arg14[%c0_53, %c0_54], %79 {strides = array<i32>} : memref<8x32xf32, #tpu.memory_space<vmem>>, vector<8x32xf32>,
    }
    %c4_i32_22 = arith.constant 4 : i32
    %c0_23 = arith.constant 0 : index
    %c0_24 = arith.constant 0 : index
    %31 = vector.load %arg14[%c0_23, %c0_24] : memref<8x32xf32, #tpu.memory_space<vmem>>, vector<8x32xf32>
    %c0_25 = arith.constant 0 : index
    %c0_26 = arith.constant 0 : index
    %32 = vector.load %arg8[%c0_25, %c0_26] : memref<1x32xf32, #tpu.memory_space<vmem>>, vector<1x32xf32>
    %33 = vector.broadcast %32 : vector<1x32xf32> to vector<8x32xf32>
    %34 = arith.addf %31, %33 : vector<8x32xf32>
    %c0_27 = arith.constant 0 : index
    %c0_28 = arith.constant 0 : index
    %35 = vector.load %arg11[%c0_27, %c0_28] : memref<1x32xf32, #tpu.memory_space<vmem>>, vector<1x32xf32>
    %36 = arith.negf %35 : vector<1x32xf32>
    %37 = math.exp %36 : vector<1x32xf32>
    %cst_29 = arith.constant 1.000000e+00 : f32
    %38 = vector.broadcast %cst_29 : f32 to vector<1x32xf32>
    %39 = arith.addf %38, %37 : vector<1x32xf32>
    %40 = arith.divf %38, %39 : vector<1x32xf32>
    %41 = vector.extract_strided_slice %6 {offsets = [0, 32], sizes = [8, 32], strides = [1, 1]} : vector<8x64xf32> to vector<8x32xf32>
    %42 = vector.broadcast %40 : vector<1x32xf32> to vector<8x32xf32>
    %43 = arith.mulf %41, %42 : vector<8x32xf32>
    %c0_30 = arith.constant 0 : index
    %c0_31 = arith.constant 0 : index
    %c0_32 = arith.constant 0 : index
    %44 = vector.load %arg10[%c0_30, %c0_31, %c0_32] : memref<1x8x32xf32, #tpu.memory_space<vmem>>, vector<1x8x32xf32>
    %45 = vector.shape_cast %44 : vector<1x8x32xf32> to vector<8x32xf32>
    %46 = arith.mulf %43, %45 : vector<8x32xf32>
    %47 = arith.addf %34, %46 : vector<8x32xf32>
    %c0_33 = arith.constant 0 : index
    %c0_34 = arith.constant 0 : index
    %c0_35 = arith.constant 0 : index
    %48 = vector.load %arg12[%c0_33, %c0_34, %c0_35] : memref<1x8x32xf32, #tpu.memory_space<vmem>>, vector<1x8x32xf32>
    %49 = vector.shape_cast %48 : vector<1x8x32xf32> to vector<8x32xf32>
    %50 = vector.shape_cast %47 : vector<8x32xf32> to vector<1x8x32xf32>
    tpu.vector_store %arg12[%c0_33, %c0_34, %c0_35], %50 {strides = array<i32>} : memref<1x8x32xf32, #tpu.memory_space<vmem>>, vector<1x8x32xf32>,
    return
  }
  func.func @transform_0(%arg0: i32, %arg1: i32) -> (i32, i32, i32) {
    %c0_i32 = arith.constant 0 : i32
    %c0_i32_0 = arith.constant 0 : i32
    return %arg0, %arg1, %c0_i32 : i32, i32, i32
  }
  func.func @transform_1(%arg0: i32, %arg1: i32) -> (i32, i32, i32, i32) {
    %c0_i32 = arith.constant 0 : i32
    %c0_i32_0 = arith.constant 0 : i32
    %c0_i32_1 = arith.constant 0 : i32
    %c0_i32_2 = arith.constant 0 : i32
    return %arg0, %c0_i32, %c0_i32_0, %c0_i32_1 : i32, i32, i32, i32
  }
  func.func @transform_2(%arg0: i32, %arg1: i32) -> (i32, i32, i32, i32) {
    %c0_i32 = arith.constant 0 : i32
    %c0_i32_0 = arith.constant 0 : i32
    %c0_i32_1 = arith.constant 0 : i32
    %c0_i32_2 = arith.constant 0 : i32
    return %arg0, %c0_i32, %c0_i32_0, %c0_i32_1 : i32, i32, i32, i32
  }
  func.func @transform_3(%arg0: i32, %arg1: i32) -> (i32, i32) {
    %c0_i32 = arith.constant 0 : i32
    %c0_i32_0 = arith.constant 0 : i32
    %c0_i32_1 = arith.constant 0 : i32
    return %c0_i32, %c0_i32_0 : i32, i32
  }
  func.func @transform_4(%arg0: i32, %arg1: i32) -> (i32, i32) {
    %c0_i32 = arith.constant 0 : i32
    %c0_i32_0 = arith.constant 0 : i32
    %c0_i32_1 = arith.constant 0 : i32
    return %c0_i32, %c0_i32_0 : i32, i32
  }
  func.func @transform_5(%arg0: i32, %arg1: i32) -> (i32, i32, i32) {
    %c0_i32 = arith.constant 0 : i32
    %c0_i32_0 = arith.constant 0 : i32
    %c0_i32_1 = arith.constant 0 : i32
    %c0_i32_2 = arith.constant 0 : i32
    return %c0_i32, %c0_i32_0, %c0_i32_1 : i32, i32, i32
  }
  func.func @transform_6(%arg0: i32, %arg1: i32) -> (i32, i32) {
    %c0_i32 = arith.constant 0 : i32
    %c0_i32_0 = arith.constant 0 : i32
    %c0_i32_1 = arith.constant 0 : i32
    return %c0_i32, %c0_i32_0 : i32, i32
  }
  func.func @transform_7(%arg0: i32, %arg1: i32) -> (i32, i32, i32) {
    %c0_i32 = arith.constant 0 : i32
    %c0_i32_0 = arith.constant 0 : i32
    %c0_i32_1 = arith.constant 0 : i32
    return %arg0, %c0_i32, %c0_i32_0 : i32, i32, i32
  }
  func.func @transform_8(%arg0: i32, %arg1: i32) -> (i32, i32, i32) {
    %c0_i32 = arith.constant 0 : i32
    %c0_i32_0 = arith.constant 0 : i32
    return %arg0, %arg1, %c0_i32 : i32, i32, i32
  }
  func.func @transform_9(%arg0: i32, %arg1: i32) -> (i32, i32) {
    %c0_i32 = arith.constant 0 : i32
    %c0_i32_0 = arith.constant 0 : i32
    %c0_i32_1 = arith.constant 0 : i32
    return %c0_i32, %c0_i32_0 : i32, i32
  }
  func.func @transform_10(%arg0: i32, %arg1: i32) -> (i32, i32, i32) {
    %c0_i32 = arith.constant 0 : i32
    %c0_i32_0 = arith.constant 0 : i32
    return %arg0, %arg1, %c0_i32 : i32, i32, i32
  }
}

</mosaic_0001>

<llo_original>
// kernel: tpu_custom_call.1
$region0: #{tpu_custom_call.1}
  #allocation0 [shape = 'u32[]', space=smem, size = 0x4, offset = 0x4, fixed_abs, tag = 'smem constant byte address 0x4 - core index']
  #allocation1 [shape = 'u32[144,128]{1,0:T(1,128)}', space=vmem, size = 0x12000, scoped, tag = 'internal scratch']
  #allocation2 [shape = 'f32[4,8,8]{2,1,0:T(8,128)}', space=vmem, size = 0x4000, scoped, tag = 'scratch operand']
  #allocation3 [shape = 'f32[8,32]{1,0:T(8,128)}', space=vmem, size = 0x1000, scoped, tag = 'scratch operand']
  %s0 = inlined_call_operand.hbm [shape: f32[2,8,32], index: 0, kind: input, shape index: {}]
  %s1 = inlined_call_operand.hbm [shape: f32[2,4,8,8], index: 1, kind: input, shape index: {}]
  %s2 = inlined_call_operand.hbm [shape: f32[2,4,8,8], index: 2, kind: input, shape index: {}]
  %s3 = inlined_call_operand.hbm [shape: f32[32,64], index: 3, kind: input, shape index: {}]
  %s4 = inlined_call_operand.vmem [shape: f32[1,64], index: 4, kind: input, shape index: {}]
  %s5 = inlined_call_operand.hbm [shape: f32[4,8,32], index: 5, kind: input, shape index: {}]
  %s6 = inlined_call_operand.vmem [shape: f32[1,32], index: 6, kind: input, shape index: {}]
  %s7 = inlined_call_operand.vmem [shape: f32[2,1,8], index: 7, kind: input, shape index: {}]
  %s8 = inlined_call_operand.vmem [shape: f32[2,8,32], index: 8, kind: input, shape index: {}]
  %s9 = inlined_call_operand.vmem [shape: f32[1,32], index: 9, kind: input, shape index: {}]
  %s10 = inlined_call_operand.hbm [shape: f32[2,8,32], index: 10, kind: output, shape index: {}]
  %s11 = sld [smem:[#allocation0]]
  $region100: #{tpu_custom_call.1} parent=0
    _
  %s13 = ssub.s32 1, %s11
  %s14 = scalar_select 0, %s13, %s11
  $region1: #{tpu_custom_call.1} parent=0
    #allocation4 [shape = 'u8[8192]{0}', space=vmem, size = 0x2000, scoped, tag = 'input window, operand 0']
    #allocation5 [shape = 's32[2]{0}', space=sflag, size = 0x8, scoped, tag = 'scoped memory for tpu_custom_call.1']
    #allocation6 [shape = 's32[2]{0}', space=sflag, size = 0x8, scoped, tag = 'scoped memory for tpu_custom_call.1']
    #allocation7 [shape = 'u8[32768]{0}', space=vmem, size = 0x8000, scoped, tag = 'input window, operand 1']
    #allocation8 [shape = 's32[2]{0}', space=sflag, size = 0x8, scoped, tag = 'scoped memory for tpu_custom_call.1']
    #allocation9 [shape = 'u8[32768]{0}', space=vmem, size = 0x8000, scoped, tag = 'input window, operand 2']
    #allocation10 [shape = 'u8[16384]{0}', space=vmem, size = 0x4000, scoped, tag = 'input window, operand 3, single buffered']
    #allocation11 [shape = 's32[1]{0}', space=sflag, size = 0x4, scoped, tag = 'scoped memory for tpu_custom_call.1']
    #allocation12 [shape = 'u8[16384]{0}', space=vmem, size = 0x4000, scoped, tag = 'input window, operand 5, single buffered']
    #allocation13 [shape = 'u8[8192]{0}', space=vmem, size = 0x2000, scoped, tag = 'output window, operand 0']
    %15 = vsyncpa [#allocation5], 0
    %s16 = scalar_lea.sflag [#allocation5], 1
    %17 = vsyncpa %s16, 0
    %18 = vsyncpa [#allocation8], 0
    %s19 = scalar_lea.sflag [#allocation8], 1
    %20 = vsyncpa %s19, 0
    %21 = vsyncpa [#allocation11], 0
    %22 = vsyncpa [#allocation6], 0
    %s23 = scalar_lea.sflag [#allocation6], 1
    %24 = vsyncpa %s23, 0
    loop: start=0, step=1, limit=4
    $region2: #{tpu_custom_call.1} parent=1 // loop_pre_header
      _
    $region3: #{tpu_custom_call.1} parent=1 // loop_header
      %s26 = sphi 0, %s30
      %p27 = scmp.ge.s32.totalorder %s26, 4
      %s33 = sphi 0, %s45
      %s34 = sphi 0, %s41
      %s35 = sphi 0, %s33
      %s36 = sphi 0, %s34
      %s37 = sphi 0, %s35
      %s38 = sphi 0, %s36
      %s50 = sphi 0, %s52
      %s53 = sphi 0, %s50
      %s54 = sphi 0, %s53
      %s70 = sphi 0, %s54
      %s76 = sphi 0, %s78
      %s79 = sphi 0, %s76
      %s80 = sphi 0, %s79
      %s96 = sphi 0, %s80
      %s102 = sphi 0, %s104
      %s105 = sphi 0, %s102
      %s106 = sphi 0, %s105
      %s122 = sphi 0, %s106
      %s126 = sphi 0, %s126
      %s128 = sphi 0, %s126
      %s129 = sphi 0, %s128
      %s143 = sphi 0, %s129
      %s147 = sphi 0, %s147
      %s149 = sphi 0, %s147
      %s150 = sphi 0, %s149
      %s164 = sphi 0, %s150
      %s168 = sphi 0, %s168
      %s170 = sphi 0, %s168
      %s171 = sphi 0, %s170
      %s185 = sphi 0, %s171
      %s189 = sphi 0, %s189
      %s191 = sphi 0, %s189
      %s192 = sphi 0, %s191
      %s206 = sphi 0, %s192
      %s212 = sphi 0, %s214
      %s215 = sphi 0, %s212
      %s216 = sphi 0, %s215
      %s232 = sphi 0, %s216
      %s240 = sphi 0, %s242
      %s243 = sphi 0, %s240
      %s244 = sphi 0, %s243
      %s260 = sphi 0, %s244
      %s264 = sphi 0, %s264
      %s266 = sphi 0, %s264
      %s267 = sphi 0, %s266
      %s281 = sphi 0, %s267
      %s289 = sphi 0, %s291
      %s292 = sphi 0, %s289
      %s293 = sphi 0, %s292
      %s309 = sphi 0, %s293
    $region4: #{tpu_custom_call.1} parent=1 // loop_header_branch
      %29 = sbr.rel (%p27) target = $region8
    $region5: #{tpu_custom_call.1} parent=1 // loop_body
      %s31 = ssub.s32 %s26, 1
      %s32 = ssub.s32 %s26, 2
      %s39 = sadd.s32 1, %s34
      %p40 = scmp.ge.s32.totalorder %s39, 1
      %s41 = scalar_select %p40, 0, %s39
      %s42 = sadd.s32 1, %s33
      %s43 = scalar_select %p40, %s42, %s33
      %p44 = scmp.ge.s32.totalorder %s43, 2
      %s45 = scalar_select %p44, 0, %s43
      %s46 = ssub.s32 %s33, %s45
      %s47 = ssub.s32 %s34, %s41
      %s48 = sor.u32 %s46, %s47
      %p49 = scmp.eq.s32.totalorder %s48, 0
      %s51 = sadd.s32 %s50, 1
      %s52 = scalar_select %p49, %s50, %s51
      %p55 = pneg %p49
      %p56 = scmp.eq.s32.totalorder %s26, 1
      %p57 = por %p55, %p56
      %p58 = scmp.ne.s32.totalorder %s50, %s53
      %p59 = scmp.eq.s32.totalorder %s26, 0
      %p60 = por %p58, %p59
      %p61 = scmp.ne.s32.totalorder %s50, %s53
      %p62 = scmp.eq.s32.totalorder %s31, 1
      %p63 = por %p61, %p62
      %p64 = scmp.ne.s32.totalorder %s53, %s54
      %p65 = scmp.eq.s32.totalorder %s31, 0
      %p66 = por %p64, %p65
      %p67 = scmp.ne.s32.totalorder %s53, %s54
      %p68 = scmp.eq.s32.totalorder %s32, 1
      %p69 = por %p67, %p68
      %p71 = scmp.ne.s32.totalorder %s54, %s70
      %p72 = scmp.eq.s32.totalorder %s32, 0
      %p73 = por %p71, %p72
      %s74 = ssub.s32 %s33, %s45
      %p75 = scmp.eq.s32.totalorder %s74, 0
      %s77 = sadd.s32 %s76, 1
      %s78 = scalar_select %p75, %s76, %s77
      %p81 = pneg %p75
      %p82 = scmp.eq.s32.totalorder %s26, 1
      %p83 = por %p81, %p82
      %p84 = scmp.ne.s32.totalorder %s76, %s79
      %p85 = scmp.eq.s32.totalorder %s26, 0
      %p86 = por %p84, %p85
      %p87 = scmp.ne.s32.totalorder %s76, %s79
      %p88 = scmp.eq.s32.totalorder %s31, 1
      %p89 = por %p87, %p88
      %p90 = scmp.ne.s32.totalorder %s79, %s80
      %p91 = scmp.eq.s32.totalorder %s31, 0
      %p92 = por %p90, %p91
      %p93 = scmp.ne.s32.totalorder %s79, %s80
      %p94 = scmp.eq.s32.totalorder %s32, 1
      %p95 = por %p93, %p94
      %p97 = scmp.ne.s32.totalorder %s80, %s96
      %p98 = scmp.eq.s32.totalorder %s32, 0
      %p99 = por %p97, %p98
      %s100 = ssub.s32 %s33, %s45
      %p101 = scmp.eq.s32.totalorder %s100, 0
      %s103 = sadd.s32 %s102, 1
      %s104 = scalar_select %p101, %s102, %s103
      %p107 = pneg %p101
      %p108 = scmp.eq.s32.totalorder %s26, 1
      %p109 = por %p107, %p108
      %p110 = scmp.ne.s32.totalorder %s102, %s105
      %p111 = scmp.eq.s32.totalorder %s26, 0
      %p112 = por %p110, %p111
      %p113 = scmp.ne.s32.totalorder %s102, %s105
      %p114 = scmp.eq.s32.totalorder %s31, 1
      %p115 = por %p113, %p114
      %p116 = scmp.ne.s32.totalorder %s105, %s106
      %p117 = scmp.eq.s32.totalorder %s31, 0
      %p118 = por %p116, %p117
      %p119 = scmp.ne.s32.totalorder %s105, %s106
      %p120 = scmp.eq.s32.totalorder %s32, 1
      %p121 = por %p119, %p120
      %p123 = scmp.ne.s32.totalorder %s106, %s122
      %p124 = scmp.eq.s32.totalorder %s32, 0
      %p125 = por %p123, %p124
      %s127 = sadd.s32 %s126, 1
      %p130 = scmp.eq.s32.totalorder %s26, 1
      %p131 = scmp.ne.s32.totalorder %s126, %s128
      %p132 = scmp.eq.s32.totalorder %s26, 0
      %p133 = por %p131, %p132
      %p134 = scmp.ne.s32.totalorder %s126, %s128
      %p135 = scmp.eq.s32.totalorder %s31, 1
      %p136 = por %p134, %p135
      %p137 = scmp.ne.s32.totalorder %s128, %s129
      %p138 = scmp.eq.s32.totalorder %s31, 0
      %p139 = por %p137, %p138
      %p140 = scmp.ne.s32.totalorder %s128, %s129
      %p141 = scmp.eq.s32.totalorder %s32, 1
      %p142 = por %p140, %p141
      %p144 = scmp.ne.s32.totalorder %s129, %s143
      %p145 = scmp.eq.s32.totalorder %s32, 0
      %p146 = por %p144, %p145
      %s148 = sadd.s32 %s147, 1
      %p151 = scmp.eq.s32.totalorder %s26, 1
      %p152 = scmp.ne.s32.totalorder %s147, %s149
      %p153 = scmp.eq.s32.totalorder %s26, 0
      %p154 = por %p152, %p153
      %p155 = scmp.ne.s32.totalorder %s147, %s149
      %p156 = scmp.eq.s32.totalorder %s31, 1
      %p157 = por %p155, %p156
      %p158 = scmp.ne.s32.totalorder %s149, %s150
      %p159 = scmp.eq.s32.totalorder %s31, 0
      %p160 = por %p158, %p159
      %p161 = scmp.ne.s32.totalorder %s149, %s150
      %p162 = scmp.eq.s32.totalorder %s32, 1
      %p163 = por %p161, %p162
      %p165 = scmp.ne.s32.totalorder %s150, %s164
      %p166 = scmp.eq.s32.totalorder %s32, 0
      %p167 = por %p165, %p166
      %s169 = sadd.s32 %s168, 1
      %p172 = scmp.eq.s32.totalorder %s26, 1
      %p173 = scmp.ne.s32.totalorder %s168, %s170
      %p174 = scmp.eq.s32.totalorder %s26, 0
      %p175 = por %p173, %p174
      %p176 = scmp.ne.s32.totalorder %s168, %s170
      %p177 = scmp.eq.s32.totalorder %s31, 1
      %p178 = por %p176, %p177
      %p179 = scmp.ne.s32.totalorder %s170, %s171
      %p180 = scmp.eq.s32.totalorder %s31, 0
      %p181 = por %p179, %p180
      %p182 = scmp.ne.s32.totalorder %s170, %s171
      %p183 = scmp.eq.s32.totalorder %s32, 1
      %p184 = por %p182, %p183
      %p186 = scmp.ne.s32.totalorder %s171, %s185
      %p187 = scmp.eq.s32.totalorder %s32, 0
      %p188 = por %p186, %p187
      %s190 = sadd.s32 %s189, 1
      %p193 = scmp.eq.s32.totalorder %s26, 1
      %p194 = scmp.ne.s32.totalorder %s189, %s191
      %p195 = scmp.eq.s32.totalorder %s26, 0
      %p196 = por %p194, %p195
      %p197 = scmp.ne.s32.totalorder %s189, %s191
      %p198 = scmp.eq.s32.totalorder %s31, 1
      %p199 = por %p197, %p198
      %p200 = scmp.ne.s32.totalorder %s191, %s192
      %p201 = scmp.eq.s32.totalorder %s31, 0
      %p202 = por %p200, %p201
      %p203 = scmp.ne.s32.totalorder %s191, %s192
      %p204 = scmp.eq.s32.totalorder %s32, 1
      %p205 = por %p203, %p204
      %p207 = scmp.ne.s32.totalorder %s192, %s206
      %p208 = scmp.eq.s32.totalorder %s32, 0
      %p209 = por %p207, %p208
      %s210 = ssub.s32 %s33, %s45
      %p211 = scmp.eq.s32.totalorder %s210, 0
      %s213 = sadd.s32 %s212, 1
      %s214 = scalar_select %p211, %s212, %s213
      %p217 = pneg %p211
      %p218 = scmp.eq.s32.totalorder %s26, 1
      %p219 = por %p217, %p218
      %p220 = scmp.ne.s32.totalorder %s212, %s215
      %p221 = scmp.eq.s32.totalorder %s26, 0
      %p222 = por %p220, %p221
      %p223 = scmp.ne.s32.totalorder %s212, %s215
      %p224 = scmp.eq.s32.totalorder %s31, 1
      %p225 = por %p223, %p224
      %p226 = scmp.ne.s32.totalorder %s215, %s216
      %p227 = scmp.eq.s32.totalorder %s31, 0
      %p228 = por %p226, %p227
      %p229 = scmp.ne.s32.totalorder %s215, %s216
      %p230 = scmp.eq.s32.totalorder %s32, 1
      %p231 = por %p229, %p230
      %p233 = scmp.ne.s32.totalorder %s216, %s232
      %p234 = scmp.eq.s32.totalorder %s32, 0
      %p235 = por %p233, %p234
      %s236 = ssub.s32 %s33, %s45
      %s237 = ssub.s32 %s34, %s41
      %s238 = sor.u32 %s236, %s237
      %p239 = scmp.eq.s32.totalorder %s238, 0
      %s241 = sadd.s32 %s240, 1
      %s242 = scalar_select %p239, %s240, %s241
      %p245 = pneg %p239
      %p246 = scmp.eq.s32.totalorder %s26, 1
      %p247 = por %p245, %p246
      %p248 = scmp.ne.s32.totalorder %s240, %s243
      %p249 = scmp.eq.s32.totalorder %s26, 0
      %p250 = por %p248, %p249
      %p251 = scmp.ne.s32.totalorder %s240, %s243
      %p252 = scmp.eq.s32.totalorder %s31, 1
      %p253 = por %p251, %p252
      %p254 = scmp.ne.s32.totalorder %s243, %s244
      %p255 = scmp.eq.s32.totalorder %s31, 0
      %p256 = por %p254, %p255
      %p257 = scmp.ne.s32.totalorder %s243, %s244
      %p258 = scmp.eq.s32.totalorder %s32, 1
      %p259 = por %p257, %p258
      %p261 = scmp.ne.s32.totalorder %s244, %s260
      %p262 = scmp.eq.s32.totalorder %s32, 0
      %p263 = por %p261, %p262
      %s265 = sadd.s32 %s264, 1
      %p268 = scmp.eq.s32.totalorder %s26, 1
      %p269 = scmp.ne.s32.totalorder %s264, %s266
      %p270 = scmp.eq.s32.totalorder %s26, 0
      %p271 = por %p269, %p270
      %p272 = scmp.ne.s32.totalorder %s264, %s266
      %p273 = scmp.eq.s32.totalorder %s31, 1
      %p274 = por %p272, %p273
      %p275 = scmp.ne.s32.totalorder %s266, %s267
      %p276 = scmp.eq.s32.totalorder %s31, 0
      %p277 = por %p275, %p276
      %p278 = scmp.ne.s32.totalorder %s266, %s267
      %p279 = scmp.eq.s32.totalorder %s32, 1
      %p280 = por %p278, %p279
      %p282 = scmp.ne.s32.totalorder %s267, %s281
      %p283 = scmp.eq.s32.totalorder %s32, 0
      %p284 = por %p282, %p283
      %s285 = ssub.s32 %s33, %s45
      %s286 = ssub.s32 %s34, %s41
      %s287 = sor.u32 %s285, %s286
      %p288 = scmp.eq.s32.totalorder %s287, 0
      %s290 = sadd.s32 %s289, 1
      %s291 = scalar_select %p288, %s289, %s290
      %p294 = pneg %p288
      %p295 = scmp.eq.s32.totalorder %s26, 1
      %p296 = por %p294, %p295
      %p297 = scmp.ne.s32.totalorder %s289, %s292
      %p298 = scmp.eq.s32.totalorder %s26, 0
      %p299 = por %p297, %p298
      %p300 = scmp.ne.s32.totalorder %s289, %s292
      %p301 = scmp.eq.s32.totalorder %s31, 1
      %p302 = por %p300, %p301
      %p303 = scmp.ne.s32.totalorder %s292, %s293
      %p304 = scmp.eq.s32.totalorder %s31, 0
      %p305 = por %p303, %p304
      %p306 = scmp.ne.s32.totalorder %s292, %s293
      %p307 = scmp.eq.s32.totalorder %s32, 1
      %p308 = por %p306, %p307
      %p310 = scmp.ne.s32.totalorder %s293, %s309
      %p311 = scmp.eq.s32.totalorder %s32, 0
      %p312 = por %p310, %p311
      %p313 = scmp.le.s32.totalorder 1, %s26
      %p314 = scmp.lt.s32.totalorder %s26, 3
      %p315 = pnand %p313, %p314
      %p316 = pneg %p315
      // Predicated region
      $region9: #{tpu_custom_call.1} parent=5 // pred_check
        _
      $region10: #{tpu_custom_call.1} parent=5 // pred_check_branch
        %318 = sbr.rel (%p315) target = $region12
      $region11: #{tpu_custom_call.1} parent=5 // pred_region
        %s319 = ssub.s32 %s26, 1
        // Predicated region
        $region13: #{tpu_custom_call.1} parent=11 // pred_check
          %p320 = pneg %p139
        $region14: #{tpu_custom_call.1} parent=11 // pred_check_branch
          %322 = sbr.rel (%p320) target = $region16
        $region15: #{tpu_custom_call.1} parent=11 // pred_region
          %s324 = ssub.s32 512, 512
          %325 = vsyncadd [#allocation11], %s324
          %s326 = sshll.u32 [#allocation10], 4
          %s327 = int_to_ptr.vmem [resolvable:$true] %s326
          %332 = dma.hbm_to_vmem [thread:$0]  %s3, 512, %s327, [#allocation11], 128, 128, 8
        $region16: #{tpu_custom_call.1} parent=11 // pred_fallthru
          _
        // Predicated region
        $region17: #{tpu_custom_call.1} parent=11 // pred_check
          %p333 = pneg %p160
        $region18: #{tpu_custom_call.1} parent=11 // pred_check_branch
          %335 = sbr.rel (%p333) target = $region20
        $region19: #{tpu_custom_call.1} parent=11 // pred_region
          _
        $region20: #{tpu_custom_call.1} parent=11 // pred_fallthru
          _
        // Predicated region
        $region21: #{tpu_custom_call.1} parent=11 // pred_check
          %p336 = pneg %p181
        $region22: #{tpu_custom_call.1} parent=11 // pred_check_branch
          %338 = sbr.rel (%p336) target = $region24
        $region23: #{tpu_custom_call.1} parent=11 // pred_region
          %s340 = ssub.s32 512, 512
          %341 = vsyncadd [#allocation11], %s340
          %s342 = sshll.u32 [#allocation12], 4
          %s343 = int_to_ptr.vmem [resolvable:$true] %s342
          %348 = dma.hbm_to_vmem [thread:$0]  %s5, 512, %s343, [#allocation11], 128, 128, 8
        $region24: #{tpu_custom_call.1} parent=11 // pred_fallthru
          _
        // Predicated region
        $region25: #{tpu_custom_call.1} parent=11 // pred_check
          %p349 = pneg %p202
        $region26: #{tpu_custom_call.1} parent=11 // pred_check_branch
          %351 = sbr.rel (%p349) target = $region28
        $region27: #{tpu_custom_call.1} parent=11 // pred_region
          _
        $region28: #{tpu_custom_call.1} parent=11 // pred_fallthru
          _
        // Predicated region
        $region29: #{tpu_custom_call.1} parent=11 // pred_check
          %p352 = pneg %p277
        $region30: #{tpu_custom_call.1} parent=11 // pred_check_branch
          %354 = sbr.rel (%p352) target = $region32
        $region31: #{tpu_custom_call.1} parent=11 // pred_region
          _
        $region32: #{tpu_custom_call.1} parent=11 // pred_fallthru
          _
      $region12: #{tpu_custom_call.1} parent=5 // pred_fallthru
        _
      %p355 = scmp.lt.s32.totalorder %s26, 2
      // Predicated region
      $region33: #{tpu_custom_call.1} parent=5 // pred_check
        %p356 = pneg %p355
      $region34: #{tpu_custom_call.1} parent=5 // pred_check_branch
        %358 = sbr.rel (%p356) target = $region36
      $region35: #{tpu_custom_call.1} parent=5 // pred_region
        // Predicated region
        $region37: #{tpu_custom_call.1} parent=35 // pred_check
          %p359 = pneg %p60
        $region38: #{tpu_custom_call.1} parent=35 // pred_check_branch
          %361 = sbr.rel (%p359) target = $region40
        $region39: #{tpu_custom_call.1} parent=35 // pred_region
          %s362 = sand.u32 %s50, 1
          %s363 = scalar_lea.sflag [#allocation5], %s362
          %s364 = sand.u32 %s50, 1
          %s365 = smul.addr %s364, 8
          %s366 = scalar_lea.vmem [#allocation4], %s365
          %s368 = ssub.s32 128, 128
          %369 = vsyncadd %s363, %s368
          %s370 = sadd.s32 %s34, %s33
          %s371 = smul.addr %s370, 128
          %s372 = scalar_lea.hbm %s0, %s371
          %s374 = sshll.u32 %s366, 4
          %s375 = int_to_ptr.vmem [resolvable:$true] %s374
          %377 = dma.hbm_to_vmem [thread:$0]  %s372, 128, %s375, %s363
        $region40: #{tpu_custom_call.1} parent=35 // pred_fallthru
          _
        // Predicated region
        $region41: #{tpu_custom_call.1} parent=35 // pred_check
          %p378 = pneg %p86
        $region42: #{tpu_custom_call.1} parent=35 // pred_check_branch
          %380 = sbr.rel (%p378) target = $region44
        $region43: #{tpu_custom_call.1} parent=35 // pred_region
          %s381 = sand.u32 %s26, 1
          %s382 = scalar_lea.sflag [#allocation8], %s381
          %s383 = sand.u32 %s76, 1
          %s384 = smul.addr %s383, 32
          %s385 = scalar_lea.vmem [#allocation7], %s384
          %s387 = ssub.s32 512, 512
          %388 = vsyncadd %s382, %s387
          %s389 = smul.addr %s33, 4
          %s390 = smul.addr %s389, 128
          %s391 = scalar_lea.hbm %s1, %s390
          %s392 = sshll.u32 %s385, 4
          %s393 = int_to_ptr.vmem [resolvable:$true] %s392
          %398 = dma.hbm_to_vmem [thread:$0]  %s391, 512, %s393, %s382, 128, 128, 8
        $region44: #{tpu_custom_call.1} parent=35 // pred_fallthru
          _
        // Predicated region
        $region45: #{tpu_custom_call.1} parent=35 // pred_check
          %p399 = pneg %p112
        $region46: #{tpu_custom_call.1} parent=35 // pred_check_branch
          %401 = sbr.rel (%p399) target = $region48
        $region47: #{tpu_custom_call.1} parent=35 // pred_region
          %s402 = sand.u32 %s26, 1
          %s403 = scalar_lea.sflag [#allocation8], %s402
          %s404 = sand.u32 %s102, 1
          %s405 = smul.addr %s404, 32
          %s406 = scalar_lea.vmem [#allocation9], %s405
          %s408 = ssub.s32 512, 512
          %409 = vsyncadd %s403, %s408
          %s410 = smul.addr %s33, 4
          %s411 = smul.addr %s410, 128
          %s412 = scalar_lea.hbm %s2, %s411
          %s413 = sshll.u32 %s406, 4
          %s414 = int_to_ptr.vmem [resolvable:$true] %s413
          %419 = dma.hbm_to_vmem [thread:$0]  %s412, 512, %s414, %s403, 128, 128, 8
        $region48: #{tpu_custom_call.1} parent=35 // pred_fallthru
          _
        // Predicated region
        $region49: #{tpu_custom_call.1} parent=35 // pred_check
          %p420 = pneg %p222
        $region50: #{tpu_custom_call.1} parent=35 // pred_check_branch
          %422 = sbr.rel (%p420) target = $region52
        $region51: #{tpu_custom_call.1} parent=35 // pred_region
          %p423 = scmp.lt.s32.totalorder %s33, 1
          %s424 = scalar_select %p423, %s33, 1
          %s425 = scalar_lea.vmem %s7, %s424
        $region52: #{tpu_custom_call.1} parent=35 // pred_fallthru
          _
        // Predicated region
        $region53: #{tpu_custom_call.1} parent=35 // pred_check
          %p426 = pneg %p250
        $region54: #{tpu_custom_call.1} parent=35 // pred_check_branch
          %428 = sbr.rel (%p426) target = $region56
        $region55: #{tpu_custom_call.1} parent=35 // pred_region
          %p429 = scmp.lt.s32.totalorder %s33, 1
          %s430 = scalar_select %p429, %s33, 1
          %p431 = scmp.lt.s32.totalorder %s34, 0
          %s432 = scalar_select %p431, %s34, 0
          %s433 = sadd.s32 %s432, %s430
          %s434 = smul.addr %s433, 8
          %s435 = scalar_lea.vmem %s8, %s434
        $region56: #{tpu_custom_call.1} parent=35 // pred_fallthru
          _
      $region36: #{tpu_custom_call.1} parent=5 // pred_fallthru
        _
      %p436 = scmp.le.s32.totalorder 1, %s26
      %p437 = scmp.lt.s32.totalorder %s26, 3
      %p438 = pnand %p436, %p437
      %p439 = pneg %p438
      // Predicated region
      $region57: #{tpu_custom_call.1} parent=5 // pred_check
        _
      $region58: #{tpu_custom_call.1} parent=5 // pred_check_branch
        %441 = sbr.rel (%p438) target = $region60
      $region59: #{tpu_custom_call.1} parent=5 // pred_region
        %s442 = ssub.s32 %s26, 1
        %s443 = sand.u32 %s53, 1
        %s444 = scalar_lea.sflag [#allocation5], %s443
        %s445 = sand.u32 %s53, 1
        %s446 = smul.addr %s445, 8
        %s447 = scalar_lea.vmem [#allocation4], %s446
        // Predicated region
        $region61: #{tpu_custom_call.1} parent=59 // pred_check
          %p448 = pneg %p66
        $region62: #{tpu_custom_call.1} parent=59 // pred_check_branch
          %450 = sbr.rel (%p448) target = $region64
        $region63: #{tpu_custom_call.1} parent=59 // pred_region
          %451 = dma.done %s444, 128
        $region64: #{tpu_custom_call.1} parent=59 // pred_fallthru
          _
        %s452 = sand.u32 %s31, 1
        %s453 = scalar_lea.sflag [#allocation8], %s452
        %s454 = sand.u32 %s79, 1
        %s455 = smul.addr %s454, 32
        %s456 = scalar_lea.vmem [#allocation7], %s455
        // Predicated region
        $region65: #{tpu_custom_call.1} parent=59 // pred_check
          %p457 = pneg %p92
        $region66: #{tpu_custom_call.1} parent=59 // pred_check_branch
          %459 = sbr.rel (%p457) target = $region68
        $region67: #{tpu_custom_call.1} parent=59 // pred_region
          %460 = dma.done %s453, 512
        $region68: #{tpu_custom_call.1} parent=59 // pred_fallthru
          _
        %s461 = sand.u32 %s31, 1
        %s462 = scalar_lea.sflag [#allocation8], %s461
        %s463 = sand.u32 %s105, 1
        %s464 = smul.addr %s463, 32
        %s465 = scalar_lea.vmem [#allocation9], %s464
        // Predicated region
        $region69: #{tpu_custom_call.1} parent=59 // pred_check
          %p466 = pneg %p118
        $region70: #{tpu_custom_call.1} parent=59 // pred_check_branch
          %468 = sbr.rel (%p466) target = $region72
        $region71: #{tpu_custom_call.1} parent=59 // pred_region
          %469 = dma.done %s462, 512
        $region72: #{tpu_custom_call.1} parent=59 // pred_fallthru
          _
        // Predicated region
        $region73: #{tpu_custom_call.1} parent=59 // pred_check
          %p470 = pneg %p139
        $region74: #{tpu_custom_call.1} parent=59 // pred_check_branch
          %472 = sbr.rel (%p470) target = $region76
        $region75: #{tpu_custom_call.1} parent=59 // pred_region
          %473 = dma.done [#allocation11], 512
        $region76: #{tpu_custom_call.1} parent=59 // pred_fallthru
          _
        // Predicated region
        $region77: #{tpu_custom_call.1} parent=59 // pred_check
          %p474 = pneg %p181
        $region78: #{tpu_custom_call.1} parent=59 // pred_check_branch
          %476 = sbr.rel (%p474) target = $region80
        $region79: #{tpu_custom_call.1} parent=59 // pred_region
          %477 = dma.done [#allocation11], 512
        $region80: #{tpu_custom_call.1} parent=59 // pred_fallthru
          _
        %s478 = sand.u32 %s53, 1
        %s479 = scalar_lea.sflag [#allocation5], %s478
        %s480 = sand.u32 %s53, 1
        %s481 = smul.addr %s480, 8
        %s482 = scalar_lea.vmem [#allocation4], %s481
        %p483 = pneg %p66
        %p484 = pneg %p63
        %s485 = sand.u32 %s31, 1
        %s486 = scalar_lea.sflag [#allocation8], %s485
        %s487 = sand.u32 %s79, 1
        %s488 = smul.addr %s487, 32
        %s489 = scalar_lea.vmem [#allocation7], %s488
        %p490 = pneg %p92
        %p491 = pneg %p89
        %s492 = sand.u32 %s31, 1
        %s493 = scalar_lea.sflag [#allocation8], %s492
        %s494 = sand.u32 %s105, 1
        %s495 = smul.addr %s494, 32
        %s496 = scalar_lea.vmem [#allocation9], %s495
        %p497 = pneg %p118
        %p498 = pneg %p115
        %p499 = pneg %p139
        %p500 = pneg %p136
        %p501 = pneg %p160
        %p502 = pneg %p157
        %p503 = pneg %p181
        %p504 = pneg %p178
        %p505 = pneg %p202
        %p506 = pneg %p199
        %p507 = scmp.lt.s32.totalorder %s35, 1
        %s508 = scalar_select %p507, %s35, 1
        %s509 = scalar_lea.vmem %s7, %s508
        %p510 = pneg %p228
        %p511 = pneg %p225
        %p512 = scmp.lt.s32.totalorder %s35, 1
        %s513 = scalar_select %p512, %s35, 1
        %p514 = scmp.lt.s32.totalorder %s36, 0
        %s515 = scalar_select %p514, %s36, 0
        %s516 = sadd.s32 %s515, %s513
        %s517 = smul.addr %s516, 8
        %s518 = scalar_lea.vmem %s8, %s517
        %p519 = pneg %p256
        %p520 = pneg %p253
        %p521 = pneg %p277
        %p522 = pneg %p274
        %p523 = pneg %p305
        %p524 = pneg %p302
        %s525 = sand.u32 %s292, 1
        %s526 = scalar_lea.sflag [#allocation6], %s525
        %s527 = sand.u32 %s292, 1
        %s528 = smul.addr %s527, 8
        %s529 = scalar_lea.vmem [#allocation13], %s528
        %p530 = scmp.lt.s32.totalorder %s35, 1
        %s531 = scalar_select %p530, %s35, 1
        %s532 = scalar_lea.vmem %s7, %s531
        %p533 = scmp.lt.s32.totalorder %s35, 1
        %s534 = scalar_select %p533, %s35, 1
        %p535 = scmp.lt.s32.totalorder %s36, 0
        %s536 = scalar_select %p535, %s36, 0
        %s537 = sadd.s32 %s536, %s534
        %s538 = smul.addr %s537, 8
        %s539 = scalar_lea.vmem %s8, %s538
        %v540 = vld [vmem:[%s447] sm:$0xff]
        %v541 = vld [vmem:[#allocation10] sm:$0xff]
        %v542 = vld [vmem:[#allocation10 + $0x8] sm:$0xff]
        %v543 = vld [vmem:[#allocation10 + $0x10] sm:$0xff]
        %v544 = vld [vmem:[#allocation10 + $0x18] sm:$0xff]
        %v545 = vld [vmem:[%s4] sm:$0x1]
        %v547 = vlaneseq
        %v548 = vshrl.u32 %v547, 7
        %v549 = vsub.s32 0, %v548
        %v550 = vrot.slane %v545, %v549
        %vm552 = vcmask 261120
        %v554 = vsel %vm552, %v540, 0
        %556 = vmatprep.subr.mxu0 0.0
        %557 = vmatpush1.msra.mxu0 %v541
        %558 = vmatprep.subr.mxu0 0.0
        %559 = vmatpush1.msra.mxu0 %v542
        %560 = vmatprep.subr.mxu0 0.0
        %561 = vmatpush1.msra.mxu0 %v543
        %562 = vmatprep.subr.mxu0 0.0
        %563 = vmatpush1.msra.mxu0 %v544
        %564 = vmatprep.subr.mxu0 0.0
        %565 = vmatpush1.msra.mxu0 0.0
        %566 = vmatprep.subr.mxu0 0.0
        %567 = vmatpush1.msra.mxu0 0.0
        %568 = vmatprep.subr.mxu0 0.0
        %569 = vmatpush1.msra.mxu0 0.0
        %570 = vmatprep.subr.mxu0 0.0
        %571 = vmatpush1.msra.mxu0 0.0
        %572 = vmatprep.subr.mxu0 0.0
        %573 = vmatpush1.msra.mxu0 0.0
        %574 = vmatprep.subr.mxu0 0.0
        %575 = vmatpush1.msra.mxu0 0.0
        %576 = vmatprep.subr.mxu0 0.0
        %577 = vmatpush1.msra.mxu0 0.0
        %578 = vmatprep.subr.mxu0 0.0
        %579 = vmatpush1.msra.mxu0 0.0
        %580 = vmatprep.subr.mxu0 0.0
        %581 = vmatpush1.msra.mxu0 0.0
        %582 = vmatprep.subr.mxu0 0.0
        %583 = vmatpush1.msra.mxu0 0.0
        %584 = vmatprep.subr.mxu0 0.0
        %585 = vmatpush1.msra.mxu0 0.0
        %586 = vmatprep.subr.mxu0 0.0
        %587 = vmatpush1.msra.mxu0 0.0
        %588 = vmatprep.subr.mxu0 0.0
        %589 = vmatpush1.msra.mxu0 0.0
        %590 = vmatprep.subr.mxu0 0.0
        %591 = vmatpush1.msra.mxu0 0.0
        %592 = vmatprep.subr.mxu0 0.0
        %593 = vmatpush1.msra.mxu0 0.0
        %594 = vmatprep.subr.mxu0 0.0
        %595 = vmatpush1.msra.mxu0 0.0
        %596 = vmatprep.subr.mxu0 0.0
        %597 = vmatpush1.msra.mxu0 0.0
        %598 = vmatprep.subr.mxu0 0.0
        %599 = vmatpush1.msra.mxu0 0.0
        %600 = vmatprep.subr.mxu0 0.0
        %601 = vmatpush1.msra.mxu0 0.0
        %602 = vmatprep.subr.mxu0 0.0
        %603 = vmatpush1.msra.mxu0 0.0
        %604 = vmatprep.subr.mxu0 0.0
        %605 = vmatpush1.msra.mxu0 0.0
        %606 = vmatprep.subr.mxu0 0.0
        %607 = vmatpush1.msra.mxu0 0.0
        %608 = vmatprep.subr.mxu0 0.0
        %609 = vmatpush1.msra.mxu0 0.0
        %610 = vmatprep.subr.mxu0 0.0
        %611 = vmatpush1.msra.mxu0 0.0
        %612 = vmatprep.subr.mxu0 0.0
        %613 = vmatpush1.msra.mxu0 0.0
        %614 = vmatprep.subr.mxu0 0.0
        %615 = vmatpush1.msra.mxu0 0.0
        %616 = vmatprep.subr.mxu0 0.0
        %617 = vmatpush1.msra.mxu0 0.0
        %618 = vmatprep.subr.mxu0 0.0
        %619 = vmatpush1.msra.mxu0 0.0
        %620 = vmatprep.mubr.f32.mxu0 0.0
        %621 = vmatmul.mubr.f32.gmra.mrb[0].mxu0 %v554
        %v622 = vpop.f32.mrb[0].mxu0
        %v623 = vadd.f32 %v550, %v622
        %v624 = vpop.f32.mrb[0].mxu0
        %625 = vdwg.mxu0
        %v626 = vmul.f32 %v623, 0.35355338
        %vm627 = vcmask 64512
        %628 = vst.msk [vmem:[#allocation2] sm:$0xff] %vm627, %v626
        %630 = vrot.lane.b32.xlu0 %v626, 120
        %v631 = vpop.permute.xlu0 %630
        %s633 = scalar_lea.vmem [#allocation2], 8
        %634 = vst.msk [vmem:[%s633] sm:$0xff] %vm627, %v631
        %635 = vrot.lane.b32.xlu0 %v626, 112
        %v636 = vpop.permute.xlu0 %635
        %s638 = scalar_lea.vmem [#allocation2], 16
        %639 = vst.msk [vmem:[%s638] sm:$0xff] %vm627, %v636
        %640 = vrot.lane.b32.xlu0 %v626, 104
        %v641 = vpop.permute.xlu0 %640
        %s643 = scalar_lea.vmem [#allocation2], 24
        %644 = vst.msk [vmem:[%s643] sm:$0xff] %vm627, %v641
        %v645 = vld [vmem:[%s532] sm:$0x1]
        %646 = vst.msk [vmem:[#allocation3] sm:$0xff] %vm552, 0.0
        loop: start=0, step=1, limit=4
        $region81: #{tpu_custom_call.1} parent=59 // loop_pre_header
          _
        $region82: #{tpu_custom_call.1} parent=59 // loop_header
          %s648 = sphi 0, %s652
          %p649 = scmp.ge.s32.totalorder %s648, 4
        $region83: #{tpu_custom_call.1} parent=59 // loop_header_branch
          %651 = sbr.rel (%p649) target = $region87
        $region84: #{tpu_custom_call.1} parent=59 // loop_body
          %s653 = smul.u32 %s648, 8
          %s654 = scalar_lea.vmem [#allocation2], %s653
          %v655 = vld [vmem:[%s654] sm:$0xff]
          %s656 = scalar_lea.vmem %s456, %s653 [#allocation7]
          %v657 = vld [vmem:[%s656] sm:$0xff]
          %s658 = scalar_lea.vmem %s465, %s653 [#allocation9]
          %v659 = vld [vmem:[%s658] sm:$0xff]
          %v661 = vlaneseq
          %v662 = vshrl.u32 %v661, 7
          %v663 = vsub.s32 0, %v662
          %v664 = vrot.slane %v645, %v663
          %v667 = vsel %vm627, %v655, 0
          %v670 = vsel %vm627, %v657, 0
          %672 = vmatprep.subr.mxu0 0.0
          %673 = vmatpush1.xpose.msra.mxu0 %v670
          %674 = vmatprep.subr.mxu0 0.0
          %675 = vmatpush1.xpose.msra.mxu0 0.0
          %676 = vmatprep.subr.mxu0 0.0
          %677 = vmatpush1.xpose.msra.mxu0 0.0
          %678 = vmatprep.subr.mxu0 0.0
          %679 = vmatpush1.xpose.msra.mxu0 0.0
          %680 = vmatprep.subr.mxu0 0.0
          %681 = vmatpush1.xpose.msra.mxu0 0.0
          %682 = vmatprep.subr.mxu0 0.0
          %683 = vmatpush1.xpose.msra.mxu0 0.0
          %684 = vmatprep.subr.mxu0 0.0
          %685 = vmatpush1.xpose.msra.mxu0 0.0
          %686 = vmatprep.subr.mxu0 0.0
          %687 = vmatpush1.xpose.msra.mxu0 0.0
          %688 = vmatprep.subr.mxu0 0.0
          %689 = vmatpush1.xpose.msra.mxu0 0.0
          %690 = vmatprep.subr.mxu0 0.0
          %691 = vmatpush1.xpose.msra.mxu0 0.0
          %692 = vmatprep.subr.mxu0 0.0
          %693 = vmatpush1.xpose.msra.mxu0 0.0
          %694 = vmatprep.subr.mxu0 0.0
          %695 = vmatpush1.xpose.msra.mxu0 0.0
          %696 = vmatprep.subr.mxu0 0.0
          %697 = vmatpush1.xpose.msra.mxu0 0.0
          %698 = vmatprep.subr.mxu0 0.0
          %699 = vmatpush1.xpose.msra.mxu0 0.0
          %700 = vmatprep.subr.mxu0 0.0
          %701 = vmatpush1.xpose.msra.mxu0 0.0
          %702 = vmatprep.subr.mxu0 0.0
          %703 = vmatpush1.xpose.msra.mxu0 0.0
          %704 = vmatprep.subr.mxu0 0.0
          %705 = vmatpush1.xpose.msra.mxu0 0.0
          %706 = vmatprep.subr.mxu0 0.0
          %707 = vmatpush1.xpose.msra.mxu0 0.0
          %708 = vmatprep.subr.mxu0 0.0
          %709 = vmatpush1.xpose.msra.mxu0 0.0
          %710 = vmatprep.subr.mxu0 0.0
          %711 = vmatpush1.xpose.msra.mxu0 0.0
          %712 = vmatprep.subr.mxu0 0.0
          %713 = vmatpush1.xpose.msra.mxu0 0.0
          %714 = vmatprep.subr.mxu0 0.0
          %715 = vmatpush1.xpose.msra.mxu0 0.0
          %716 = vmatprep.subr.mxu0 0.0
          %717 = vmatpush1.xpose.msra.mxu0 0.0
          %718 = vmatprep.subr.mxu0 0.0
          %719 = vmatpush1.xpose.msra.mxu0 0.0
          %720 = vmatprep.subr.mxu0 0.0
          %721 = vmatpush1.xpose.msra.mxu0 0.0
          %722 = vmatprep.subr.mxu0 0.0
          %723 = vmatpush1.xpose.msra.mxu0 0.0
          %724 = vmatprep.subr.mxu0 0.0
          %725 = vmatpush1.xpose.msra.mxu0 0.0
          %726 = vmatprep.subr.mxu0 0.0
          %727 = vmatpush1.xpose.msra.mxu0 0.0
          %728 = vmatprep.subr.mxu0 0.0
          %729 = vmatpush1.xpose.msra.mxu0 0.0
          %730 = vmatprep.subr.mxu0 0.0
          %731 = vmatpush1.xpose.msra.mxu0 0.0
          %732 = vmatprep.subr.mxu0 0.0
          %733 = vmatpush1.xpose.msra.mxu0 0.0
          %734 = vmatprep.subr.mxu0 0.0
          %735 = vmatpush1.xpose.msra.mxu0 0.0
          %736 = vmatprep.mubr.f32.mxu0 0.0
          %737 = vmatmul.mubr.f32.gmra.mrb[0].mxu0 %v667
          %v738 = vpop.f32.mrb[0].mxu0
          %v739 = vadd.f32 %v664, %v738
          %v740 = vpop.f32.mrb[0].mxu0
          %741 = vdwg.mxu0
          %v742 = vsel %vm627, %v739, -inf
          %743 = vmax.xlane.f32.xlu0 %v742
          %v744 = vpop.xlane.xlu0 %743
          %v745 = vsub.f32 %v739, %v744
          %v746 = vmul.f32 %v745, 1.442695
          %v747 = vpow.pop %v746
          %v748 = vsel %vm627, %v747, 0.0
          %749 = vadd.xlane.f32.xlu0 %v748
          %v750 = vpop.xlane.xlu0 %749
          %v751 = vrcp.pop %v750
          %v752 = vmul.f32 %v747, %v751
          %v754 = vsel %vm627, %v752, 0
          %756 = vmatprep.subr.mxu0 0.0
          %757 = vmatpush1.msra.mxu0 %v659
          %758 = vmatprep.subr.mxu0 0.0
          %759 = vmatpush1.msra.mxu0 0.0
          %760 = vmatprep.subr.mxu0 0.0
          %761 = vmatpush1.msra.mxu0 0.0
          %762 = vmatprep.subr.mxu0 0.0
          %763 = vmatpush1.msra.mxu0 0.0
          %764 = vmatprep.subr.mxu0 0.0
          %765 = vmatpush1.msra.mxu0 0.0
          %766 = vmatprep.subr.mxu0 0.0
          %767 = vmatpush1.msra.mxu0 0.0
          %768 = vmatprep.subr.mxu0 0.0
          %769 = vmatpush1.msra.mxu0 0.0
          %770 = vmatprep.subr.mxu0 0.0
          %771 = vmatpush1.msra.mxu0 0.0
          %772 = vmatprep.subr.mxu0 0.0
          %773 = vmatpush1.msra.mxu0 0.0
          %774 = vmatprep.subr.mxu0 0.0
          %775 = vmatpush1.msra.mxu0 0.0
          %776 = vmatprep.subr.mxu0 0.0
          %777 = vmatpush1.msra.mxu0 0.0
          %778 = vmatprep.subr.mxu0 0.0
          %779 = vmatpush1.msra.mxu0 0.0
          %780 = vmatprep.subr.mxu0 0.0
          %781 = vmatpush1.msra.mxu0 0.0
          %782 = vmatprep.subr.mxu0 0.0
          %783 = vmatpush1.msra.mxu0 0.0
          %784 = vmatprep.subr.mxu0 0.0
          %785 = vmatpush1.msra.mxu0 0.0
          %786 = vmatprep.subr.mxu0 0.0
          %787 = vmatpush1.msra.mxu0 0.0
          %788 = vmatprep.subr.mxu0 0.0
          %789 = vmatpush1.msra.mxu0 0.0
          %790 = vmatprep.subr.mxu0 0.0
          %791 = vmatpush1.msra.mxu0 0.0
          %792 = vmatprep.subr.mxu0 0.0
          %793 = vmatpush1.msra.mxu0 0.0
          %794 = vmatprep.subr.mxu0 0.0
          %795 = vmatpush1.msra.mxu0 0.0
          %796 = vmatprep.subr.mxu0 0.0
          %797 = vmatpush1.msra.mxu0 0.0
          %798 = vmatprep.subr.mxu0 0.0
          %799 = vmatpush1.msra.mxu0 0.0
          %800 = vmatprep.subr.mxu0 0.0
          %801 = vmatpush1.msra.mxu0 0.0
          %802 = vmatprep.subr.mxu0 0.0
          %803 = vmatpush1.msra.mxu0 0.0
          %804 = vmatprep.subr.mxu0 0.0
          %805 = vmatpush1.msra.mxu0 0.0
          %806 = vmatprep.subr.mxu0 0.0
          %807 = vmatpush1.msra.mxu0 0.0
          %808 = vmatprep.subr.mxu0 0.0
          %809 = vmatpush1.msra.mxu0 0.0
          %810 = vmatprep.subr.mxu0 0.0
          %811 = vmatpush1.msra.mxu0 0.0
          %812 = vmatprep.subr.mxu0 0.0
          %813 = vmatpush1.msra.mxu0 0.0
          %814 = vmatprep.subr.mxu0 0.0
          %815 = vmatpush1.msra.mxu0 0.0
          %816 = vmatprep.subr.mxu0 0.0
          %817 = vmatpush1.msra.mxu0 0.0
          %818 = vmatprep.subr.mxu0 0.0
          %819 = vmatpush1.msra.mxu0 0.0
          %820 = vmatprep.mubr.f32.mxu0 0.0
          %821 = vmatmul.mubr.f32.gmra.mrb[0].mxu0 %v754
          %v822 = vpop.f32.mrb[0].mxu0
          %v823 = vadd.f32 0.0, %v822
          %v824 = vpop.f32.mrb[0].mxu0
          %825 = vdwg.mxu0
          %v826 = vld [vmem:[#allocation3] sm:$0xff]
          %s827 = scalar_lea.vmem [#allocation12], %s653
          %v828 = vld [vmem:[%s827] sm:$0xff]
          %v830 = vsel %vm627, %v823, 0
          %832 = vmatprep.subr.mxu0 0.0
          %833 = vmatpush1.msra.mxu0 %v828
          %834 = vmatprep.subr.mxu0 0.0
          %835 = vmatpush1.msra.mxu0 0.0
          %836 = vmatprep.subr.mxu0 0.0
          %837 = vmatpush1.msra.mxu0 0.0
          %838 = vmatprep.subr.mxu0 0.0
          %839 = vmatpush1.msra.mxu0 0.0
          %840 = vmatprep.subr.mxu0 0.0
          %841 = vmatpush1.msra.mxu0 0.0
          %842 = vmatprep.subr.mxu0 0.0
          %843 = vmatpush1.msra.mxu0 0.0
          %844 = vmatprep.subr.mxu0 0.0
          %845 = vmatpush1.msra.mxu0 0.0
          %846 = vmatprep.subr.mxu0 0.0
          %847 = vmatpush1.msra.mxu0 0.0
          %848 = vmatprep.subr.mxu0 0.0
          %849 = vmatpush1.msra.mxu0 0.0
          %850 = vmatprep.subr.mxu0 0.0
          %851 = vmatpush1.msra.mxu0 0.0
          %852 = vmatprep.subr.mxu0 0.0
          %853 = vmatpush1.msra.mxu0 0.0
          %854 = vmatprep.subr.mxu0 0.0
          %855 = vmatpush1.msra.mxu0 0.0
          %856 = vmatprep.subr.mxu0 0.0
          %857 = vmatpush1.msra.mxu0 0.0
          %858 = vmatprep.subr.mxu0 0.0
          %859 = vmatpush1.msra.mxu0 0.0
          %860 = vmatprep.subr.mxu0 0.0
          %861 = vmatpush1.msra.mxu0 0.0
          %862 = vmatprep.subr.mxu0 0.0
          %863 = vmatpush1.msra.mxu0 0.0
          %864 = vmatprep.subr.mxu0 0.0
          %865 = vmatpush1.msra.mxu0 0.0
          %866 = vmatprep.subr.mxu0 0.0
          %867 = vmatpush1.msra.mxu0 0.0
          %868 = vmatprep.subr.mxu0 0.0
          %869 = vmatpush1.msra.mxu0 0.0
          %870 = vmatprep.subr.mxu0 0.0
          %871 = vmatpush1.msra.mxu0 0.0
          %872 = vmatprep.subr.mxu0 0.0
          %873 = vmatpush1.msra.mxu0 0.0
          %874 = vmatprep.subr.mxu0 0.0
          %875 = vmatpush1.msra.mxu0 0.0
          %876 = vmatprep.subr.mxu0 0.0
          %877 = vmatpush1.msra.mxu0 0.0
          %878 = vmatprep.subr.mxu0 0.0
          %879 = vmatpush1.msra.mxu0 0.0
          %880 = vmatprep.subr.mxu0 0.0
          %881 = vmatpush1.msra.mxu0 0.0
          %882 = vmatprep.subr.mxu0 0.0
          %883 = vmatpush1.msra.mxu0 0.0
          %884 = vmatprep.subr.mxu0 0.0
          %885 = vmatpush1.msra.mxu0 0.0
          %886 = vmatprep.subr.mxu0 0.0
          %887 = vmatpush1.msra.mxu0 0.0
          %888 = vmatprep.subr.mxu0 0.0
          %889 = vmatpush1.msra.mxu0 0.0
          %890 = vmatprep.subr.mxu0 0.0
          %891 = vmatpush1.msra.mxu0 0.0
          %892 = vmatprep.subr.mxu0 0.0
          %893 = vmatpush1.msra.mxu0 0.0
          %894 = vmatprep.subr.mxu0 0.0
          %895 = vmatpush1.msra.mxu0 0.0
          %896 = vmatprep.mubr.f32.mxu0 0.0
          %897 = vmatmul.mubr.f32.gmra.mrb[0].mxu0 %v830
          %v898 = vpop.f32.mrb[0].mxu0
          %v899 = vadd.f32 0.0, %v898
          %v900 = vpop.f32.mrb[0].mxu0
          %901 = vdwg.mxu0
          %v902 = vadd.f32 %v826, %v899
          %903 = vst.msk [vmem:[#allocation3] sm:$0xff] %vm552, %v902
        $region85: #{tpu_custom_call.1} parent=59 // loop_footer
          %s652 = sadd.s32 1, %s648
        $region86: #{tpu_custom_call.1} parent=59 // loop_footer_branch
          %647 = sbr.rel target = $region82
        $region87: #{tpu_custom_call.1} parent=59 // loop_exit
          _
        %v904 = vld [vmem:[#allocation3] sm:$0xff]
        %v905 = vld [vmem:[%s6] sm:$0x1]
        %v907 = vlaneseq
        %v908 = vshrl.u32 %v907, 7
        %v909 = vsub.s32 0, %v908
        %v910 = vrot.slane %v905, %v909
        %v912 = vadd.f32 %v904, %v910
        %v913 = vld [vmem:[%s9] sm:$0x1]
        %v914 = vxor.u32 %v913, 2147483648
        %v915 = vmul.f32 %v914, 1.442695
        %v916 = vpow.pop %v915
        %v917 = vadd.f32 %v916, 1.0
        %v918 = vrcp.pop %v917
        %v919 = vmul.f32 1.0, %v918
        %v921 = vlaneseq
        %v922 = vshrl.u32 %v921, 7
        %v923 = vsub.s32 0, %v922
        %v924 = vrot.slane %v919, %v923
        %925 = vrot.lane.b32.xlu0 %v924, 32
        %v926 = vpop.permute.xlu0 %925
        %v928 = vmul.f32 %v623, %v926
        %v929 = vld [vmem:[%s539] sm:$0xff]
        %931 = vrot.lane.b32.xlu0 %v929, 32
        %v932 = vpop.permute.xlu0 %931
        %v934 = vmul.f32 %v928, %v932
        %936 = vrot.lane.b32.xlu0 %v934, 96
        %v937 = vpop.permute.xlu0 %936
        %v939 = vadd.f32 %v912, %v937
        %940 = vst.msk [vmem:[%s529] sm:$0xff] %vm552, %v939
        %s941 = sand.u32 %s292, 1
        %s942 = scalar_lea.sflag [#allocation6], %s941
        %s943 = sand.u32 %s292, 1
        %s944 = smul.addr %s943, 8
        %s945 = scalar_lea.vmem [#allocation13], %s944
        // Predicated region
        $region88: #{tpu_custom_call.1} parent=59 // pred_check
          %p946 = pneg %p302
        $region89: #{tpu_custom_call.1} parent=59 // pred_check_branch
          %948 = sbr.rel (%p946) target = $region91
        $region90: #{tpu_custom_call.1} parent=59 // pred_region
          %s950 = ssub.s32 128, 128
          %951 = vsyncadd %s942, %s950
          %s952 = sadd.s32 %s36, %s35
          %s953 = smul.addr %s952, 128
          %s954 = scalar_lea.hbm %s10, %s953
          %s956 = sshll.u32 %s945, 4
          %s957 = int_to_ptr.vmem [resolvable:$true] %s956
          %959 = dma.vmem_to_hbm [thread:$0]  %s957, 128, %s954, %s942
        $region91: #{tpu_custom_call.1} parent=59 // pred_fallthru
          _
      $region60: #{tpu_custom_call.1} parent=5 // pred_fallthru
        _
      %p960 = scmp.le.s32.totalorder 2, %s26
      // Predicated region
      $region92: #{tpu_custom_call.1} parent=5 // pred_check
        %p961 = pneg %p960
      $region93: #{tpu_custom_call.1} parent=5 // pred_check_branch
        %963 = sbr.rel (%p961) target = $region95
      $region94: #{tpu_custom_call.1} parent=5 // pred_region
        %s964 = ssub.s32 %s26, 2
        // Predicated region
        $region96: #{tpu_custom_call.1} parent=94 // pred_check
          %p965 = pneg %p308
        $region97: #{tpu_custom_call.1} parent=94 // pred_check_branch
          %967 = sbr.rel (%p965) target = $region99
        $region98: #{tpu_custom_call.1} parent=94 // pred_region
          %s968 = sand.u32 %s293, 1
          %s969 = scalar_lea.sflag [#allocation6], %s968
          %s970 = sand.u32 %s293, 1
          %s971 = smul.addr %s970, 8
          %s972 = scalar_lea.vmem [#allocation13], %s971
          %973 = dma.done %s969, 128
        $region99: #{tpu_custom_call.1} parent=94 // pred_fallthru
          _
      $region95: #{tpu_custom_call.1} parent=5 // pred_fallthru
        _
    $region6: #{tpu_custom_call.1} parent=1 // loop_footer
      %s30 = sadd.s32 1, %s26
    $region7: #{tpu_custom_call.1} parent=1 // loop_footer_branch
      %25 = sbr.rel target = $region3
    $region8: #{tpu_custom_call.1} parent=1 // loop_exit
      _
    %974 = vsyncpa [#allocation5], 1
    %s975 = scalar_lea.sflag [#allocation5], 1
    %976 = vsyncpa %s975, 1
    %977 = vsyncpa [#allocation8], 1
    %s978 = scalar_lea.sflag [#allocation8], 1
    %979 = vsyncpa %s978, 1
    %980 = vsyncpa [#allocation11], 1
    %981 = vsyncpa [#allocation6], 1
    %s982 = scalar_lea.sflag [#allocation6], 1
    %983 = vsyncpa %s982, 1

</llo_original>
